<compile_context>
chip_gen: v7x
topology: tpu7x:2x2x1
jax: 0.10.0
libtpu: 0.0.40
codegen_flags: <defaults>
</compile_context>

<pallas_src>
import functools

import jax
import jax.numpy as jnp
from jax.experimental import pallas as pl
from jax.experimental.pallas import tpu as pltpu

BN_EPS = 1e-5
_WZ_PAD = 512                      # branch-weight K length padded (once) to this multiple
_VMEM_BUDGET = 24 * 1024 * 1024    # headroom under v7x's 32 MiB scoped VMEM limit


def _round_up(x, m):
    return (x + m - 1) // m * m


def _pick_tk(batch, d_in):
    """Pick the K-tile: as large as possible (<=512, multiple of 128) while the
    double-buffered streaming footprint (f32 img tile + bf16 weight tile + acc +
    output) fits the VMEM budget; prefer a tile that divides d_in exactly so the
    last block is never ragged (no in-kernel mask needed)."""
    fixed = batch * 128 * 4 * 3            # f32 accumulator + double-buffered (B,128) out

    def fits(tk):
        return fixed + 2 * batch * tk * 4 + 2 * tk * 128 * 2 <= _VMEM_BUDGET

    cands = [tk for tk in (512, 384, 256, 128) if fits(tk)] or [128]
    for tk in cands:                       # clean division: no mask
        if d_in % tk == 0:
            return tk, False
    for tk in cands:                       # ragged tail: tk must divide the weight's
        if _WZ_PAD % tk == 0:              # padded K length so all wz blocks stay in-bounds
            return tk, True
    return 128, True


def _bn_relu(h, gamma, beta):
    # Training-mode BatchNorm1d (biased variance, centered two-pass) + ReLU, in f32.
    mu = jnp.mean(h, axis=0, keepdims=True)
    d = h - mu
    var = jnp.mean(d * d, axis=0, keepdims=True)
    return jnp.maximum(d * jax.lax.rsqrt(var + BN_EPS) * gamma + beta, 0.0)


def res_tn_f_kernel(img_ref, wz_ref, w1_ref, w2_ref, w3_ref, vec_ref,
                    out_ref, acc_ref, *, d_in, tk, mask_tail):
    k = pl.program_id(0)

    @pl.when(k == 0)
    def _():
        acc_ref[...] = jnp.zeros_like(acc_ref)

    # Fused branch matmul: z = imgs @ [wx | wy]  (== torch.cat([x, y], 1)).
    # Image tile arrives in f32 and is cast to bf16 here (no wrapper-side cast pass);
    # bf16 MXU operands, f32 accumulation, tiled over the contraction axis.
    x = img_ref[...]
    if mask_tail:  # ragged last K-tile: zero the out-of-bounds columns
        col = k * tk + jax.lax.broadcasted_iota(jnp.int32, (1, tk), 1)
        x = jnp.where(col < d_in, x, 0.0)
    acc_ref[...] += jnp.dot(x.astype(wz_ref.dtype), wz_ref[...],
                            preferred_element_type=jnp.float32)

    # self.final head — epilogue on the last K step only.
    @pl.when(k == pl.num_programs(0) - 1)
    def _():
        z = acc_ref[...]                         # [B, 128] f32
        vecs = vec_ref[...]                      # packed [5, 128]: g1, be1, g2, be2, b3
        g1, be1 = vecs[0:1, :], vecs[1:2, :]
        g2, be2 = vecs[2:3, :64], vecs[3:4, :64]
        b3 = vecs[4:5, :]                        # lane-padded bias (only lanes 0..1 nonzero)

        h = jnp.dot(z.astype(w1_ref.dtype), w1_ref[...],
                    preferred_element_type=jnp.float32)          # [B, 128]
        h = _bn_relu(h, g1, be1)
        h = jnp.dot(h.astype(w2_ref.dtype), w2_ref[...],
                    preferred_element_type=jnp.float32)          # [B, 64]
        h = _bn_relu(h, g2, be2)
        out_ref[...] = jnp.dot(h.astype(w3_ref.dtype), w3_ref[...],
                               preferred_element_type=jnp.float32) + b3   # [B, 128]


def init_params(key, d_in):
    """PyTorch-nn.Linear-style init; weights are pre-packed ONCE for the kernel:
    fused bf16 K-padded branch weight, bf16 head weights, lane-padded final weight."""
    def linear_w(k, fan_in, fan_out):
        kw, _ = jax.random.split(k)
        bound = 1.0 / float(fan_in) ** 0.5
        return jax.random.uniform(kw, (fan_in, fan_out), jnp.float32, -bound, bound)

    def linear_wb(k, fan_in, fan_out):
        kw, kb = jax.random.split(k)
        bound = 1.0 / float(fan_in) ** 0.5
        w = jax.random.uniform(kw, (fan_in, fan_out), jnp.float32, -bound, bound)
        b = jax.random.uniform(kb, (fan_out,), jnp.float32, -bound, bound)
        return w, b

    keys = jax.random.split(key, 5)
    wx = linear_w(keys[0], d_in, 64)            # stand-in branch 1 (-> tn_f1 output)
    wy = linear_w(keys[1], d_in, 64)            # stand-in branch 2 (-> tn_f2 output)
    wz = jnp.concatenate([wx, wy], axis=1)      # fused [d_in, 128] branch weight
    w1 = linear_w(keys[2], 128, 128)            # final[0] (bias cancelled by BN -> dropped)
    w2 = linear_w(keys[3], 128, 64)             # final[3] (bias cancelled by BN -> dropped)
    w3, b3 = linear_wb(keys[4], 64, 2)          # final[6]

    # Pre-pack (done once, not per forward call):
    kw_len = _round_up(d_in, _WZ_PAD)
    wz_p = jnp.zeros((kw_len, 128), jnp.bfloat16).at[:d_in].set(wz.astype(jnp.bfloat16))
    w3_p = jnp.zeros((64, 128), jnp.bfloat16).at[:, :2].set(w3.astype(jnp.bfloat16))

    # Pack BN affine params (default gamma=1, beta=0) and b3 into one [5, 128] array.
    vecs = jnp.zeros((5, 128), jnp.float32)
    vecs = vecs.at[0, :].set(1.0)               # gamma1
    vecs = vecs.at[2, :64].set(1.0)             # gamma2
    vecs = vecs.at[4, :2].set(b3)               # b3 (rest of the row stays 0)
    return (wz_p, w1.astype(jnp.bfloat16), w2.astype(jnp.bfloat16), w3_p, vecs)


@jax.jit
def res_tn_f_forward(images, params):
    wz, w1, w2, w3, vecs = params
    B = images.shape[0]
    img = images.reshape(B, -1)                 # f32; cast to bf16 inside the kernel
    d_in = img.shape[1]
    tk, mask_tail = _pick_tk(B, d_in)
    nk = pl.cdiv(d_in, tk)

    head_flops = 2 * B * (128 * 128 + 128 * 64 + 64 * 128)
    cost = pl.CostEstimate(
        flops=2 * B * nk * tk * 128 + head_flops,
        transcendentals=192,                    # rsqrt over (1,128)+(1,64)
        bytes_accessed=(B * d_in * 4 + wz.shape[0] * 128 * 2 + B * 128 * 4
                        + (128 * 128 + 128 * 64 + 64 * 128) * 2 + 5 * 128 * 4),
    )

    kernel = functools.partial(res_tn_f_kernel, d_in=d_in, tk=tk, mask_tail=mask_tail)
    out = pl.pallas_call(
        kernel,
        out_shape=jax.ShapeDtypeStruct((B, 128), jnp.float32),
        grid_spec=pltpu.PrefetchScalarGridSpec(
            num_scalar_prefetch=0,
            grid=(nk,),
            in_specs=[
                pl.BlockSpec((B, tk), lambda k: (0, k)),     # f32 image K-tile (streamed)
                pl.BlockSpec((tk, 128), lambda k: (k, 0)),   # bf16 fused branch weight tile
                pl.BlockSpec((128, 128), lambda k: (0, 0)),  # final[0] weight (resident)
                pl.BlockSpec((128, 64), lambda k: (0, 0)),   # final[3] weight (resident)
                pl.BlockSpec((64, 128), lambda k: (0, 0)),   # final[6] weight (lane-padded)
                pl.BlockSpec((5, 128), lambda k: (0, 0)),    # packed BN affine + b3
            ],
            out_specs=pl.BlockSpec((B, 128), lambda k: (0, 0)),
            scratch_shapes=[pltpu.VMEM((B, 128), jnp.float32)],   # f32 accumulator
        ),
        compiler_params=pltpu.CompilerParams(
            dimension_semantics=("arbitrary",),              # K is a reduction axis
            vmem_limit_bytes=32 * 1024 * 1024,               # safe on v5e/v6e/v7x
        ),
        cost_estimate=cost,
    )(img, wz, w1, w2, w3, vecs)
    return out[:, :2]                                        # lane-dense out, slice the 2 logits


def reference_forward(images, params):
    """Pure-JAX reference using the same bf16 rounding as the kernel."""
    wz, w1, w2, w3, vecs = params
    B = images.shape[0]
    img = images.reshape(B, -1)
    d_in = img.shape[1]
    hi = jax.lax.Precision.HIGHEST
    f32 = lambda a: a.astype(jnp.float32)
    bf = lambda a: a.astype(jnp.bfloat16).astype(jnp.float32)   # bf16 round-trip

    def bn_relu(h, g, b):
        mu = h.mean(0, keepdims=True)
        var = ((h - mu) ** 2).mean(0, keepdims=True)
        return jnp.maximum((h - mu) * jax.lax.rsqrt(var + BN_EPS) * g + b, 0.0)

    z = jnp.dot(bf(img), f32(wz[:d_in]), precision=hi)
    h = bn_relu(jnp.dot(bf(z), f32(w1), precision=hi), vecs[0:1, :], vecs[1:2, :])
    h = bn_relu(jnp.dot(bf(h), f32(w2), precision=hi), vecs[2:3, :64], vecs[3:4, :64])
    out = jnp.dot(bf(h), f32(w3), precision=hi) + vecs[4:5, :]
    return out[:, :2]


if __name__ == "__main__":
    key = jax.random.PRNGKey(0)
    k_img, k_par = jax.random.split(key)

    B, C, H, W = 2, 3, 16, 16          # small shapes consistent with an image-input module
    images = jax.random.normal(k_img, (B, C, H, W), jnp.float32)
    params = init_params(k_par, C * H * W)

    out = res_tn_f_forward(images, params)
    jax.block_until_ready(out)
    assert out.shape == (B, 2) and out.dtype == jnp.float32

    ref = reference_forward(images, params)
    assert jnp.allclose(out, ref, atol=5e-2, rtol=5e-2), (out, ref)
    print("KERNEL_OK")
</pallas_src>

<mosaic_0001>
module attributes {stable_mosaic.version = 11 : i64} {
  func.func @res_tn_f_kernel(%arg0: i32, %arg1: memref<2x384xf32, #tpu.memory_space<vmem>>, %arg2: memref<384x128xbf16, #tpu.memory_space<vmem>>, %arg3: memref<128x128xbf16, #tpu.memory_space<vmem>>, %arg4: memref<128x64xbf16, #tpu.memory_space<vmem>>, %arg5: memref<64x128xbf16, #tpu.memory_space<vmem>>, %arg6: memref<5x128xf32, #tpu.memory_space<vmem>>, %arg7: memref<2x128xf32, #tpu.memory_space<vmem>>, %arg8: memref<2x128xf32, #tpu.memory_space<vmem>>) attributes {dimension_semantics = [#tpu.dimension_semantics<arbitrary>], iteration_bounds = array<i64: 2>, scalar_prefetch = 0 : i64, scratch_operands = 1 : i64, tpu.core_type = #tpu.core_type<tc>, window_params = [{transform_indices = @transform_0, window_bounds = array<i64: 2, 384>}, {transform_indices = @transform_1, window_bounds = array<i64: 384, 128>}, {pipeline_mode = #tpu.pipeline_mode<synchronous>, transform_indices = @transform_2, window_bounds = array<i64: 128, 128>}, {pipeline_mode = #tpu.pipeline_mode<synchronous>, transform_indices = @transform_3, window_bounds = array<i64: 128, 64>}, {pipeline_mode = #tpu.pipeline_mode<synchronous>, transform_indices = @transform_4, window_bounds = array<i64: 64, 128>}, {pipeline_mode = #tpu.pipeline_mode<synchronous>, transform_indices = @transform_5, window_bounds = array<i64: 5, 128>}, {pipeline_mode = #tpu.pipeline_mode<synchronous>, transform_indices = @transform_6, window_bounds = array<i64: 2, 128>}]} {
    %c0_i32 = arith.constant 0 : i32
    %0 = arith.cmpi eq, %arg0, %c0_i32 : i32
    %1 = arith.extui %0 : i1 to i32
    %c0_i32_0 = arith.constant 0 : i32
    %2 = arith.cmpi ne, %1, %c0_i32_0 : i32
    scf.if %2 {
      %cst_9 = arith.constant 0.000000e+00 : f32
      %13 = vector.broadcast %cst_9 : f32 to vector<2x128xf32>
      %c0_10 = arith.constant 0 : index
      %c0_11 = arith.constant 0 : index
      %14 = vector.load %arg8[%c0_10, %c0_11] : memref<2x128xf32, #tpu.memory_space<vmem>>, vector<2x128xf32>
      tpu.vector_store %arg8[%c0_10, %c0_11], %13 {strides = array<i32>} : memref<2x128xf32, #tpu.memory_space<vmem>>, vector<2x128xf32>,
    } else {
    }
    %c0 = arith.constant 0 : index
    %c0_1 = arith.constant 0 : index
    %3 = vector.load %arg1[%c0, %c0_1] : memref<2x384xf32, #tpu.memory_space<vmem>>, vector<2x384xf32>
    %c0_2 = arith.constant 0 : index
    %c0_3 = arith.constant 0 : index
    %4 = vector.load %arg8[%c0_2, %c0_3] : memref<2x128xf32, #tpu.memory_space<vmem>>, vector<2x128xf32>
    %5 = arith.truncf %3 : vector<2x384xf32> to vector<2x384xbf16>
    %c0_4 = arith.constant 0 : index
    %c0_5 = arith.constant 0 : index
    %6 = vector.load %arg2[%c0_4, %c0_5] : memref<384x128xbf16, #tpu.memory_space<vmem>>, vector<384x128xbf16>
    %cst = arith.constant dense<0.000000e+00> : vector<2x128xf32>
    %7 = tpu.matmul %5, %6, %cst {dimension_numbers = #tpu.dot_dimension_numbers<[1], [0], [0], [1], [0, 0, 1, 1], [], []>} : vector<2x384xbf16>, vector<384x128xbf16>, vector<2x128xf32> -> vector<2x128xf32>
    %8 = arith.addf %4, %7 : vector<2x128xf32>
    %c0_6 = arith.constant 0 : index
    %c0_7 = arith.constant 0 : index
    %9 = vector.load %arg8[%c0_6, %c0_7] : memref<2x128xf32, #tpu.memory_space<vmem>>, vector<2x128xf32>
    tpu.vector_store %arg8[%c0_6, %c0_7], %8 {strides = array<i32>} : memref<2x128xf32, #tpu.memory_space<vmem>>, vector<2x128xf32>,
    %c1_i32 = arith.constant 1 : i32
    %10 = arith.cmpi eq, %arg0, %c1_i32 : i32
    %11 = arith.extui %10 : i1 to i32
    %c0_i32_8 = arith.constant 0 : i32
    %12 = arith.cmpi ne, %11, %c0_i32_8 : i32
    scf.if %12 {
      %c0_9 = arith.constant 0 : index
      %c0_10 = arith.constant 0 : index
      %13 = vector.load %arg8[%c0_9, %c0_10] : memref<2x128xf32, #tpu.memory_space<vmem>>, vector<2x128xf32>
      %c0_11 = arith.constant 0 : index
      %c0_12 = arith.constant 0 : index
      %14 = vector.load %arg6[%c0_11, %c0_12] : memref<5x128xf32, #tpu.memory_space<vmem>>, vector<5x128xf32>
      %15 = vector.extract_strided_slice %14 {offsets = [0, 0], sizes = [1, 128], strides = [1, 1]} : vector<5x128xf32> to vector<1x128xf32>
      %16 = vector.extract_strided_slice %14 {offsets = [1, 0], sizes = [1, 128], strides = [1, 1]} : vector<5x128xf32> to vector<1x128xf32>
      %17 = vector.extract_strided_slice %14 {offsets = [2, 0], sizes = [1, 64], strides = [1, 1]} : vector<5x128xf32> to vector<1x64xf32>
      %18 = vector.extract_strided_slice %14 {offsets = [3, 0], sizes = [1, 64], strides = [1, 1]} : vector<5x128xf32> to vector<1x64xf32>
      %19 = vector.extract_strided_slice %14 {offsets = [4, 0], sizes = [1, 128], strides = [1, 1]} : vector<5x128xf32> to vector<1x128xf32>
      %20 = arith.truncf %13 : vector<2x128xf32> to vector<2x128xbf16>
      %c0_13 = arith.constant 0 : index
      %c0_14 = arith.constant 0 : index
      %21 = vector.load %arg3[%c0_13, %c0_14] : memref<128x128xbf16, #tpu.memory_space<vmem>>, vector<128x128xbf16>
      %cst_15 = arith.constant dense<0.000000e+00> : vector<2x128xf32>
      %22 = tpu.matmul %20, %21, %cst_15 {dimension_numbers = #tpu.dot_dimension_numbers<[1], [0], [0], [1], [0, 0, 1, 1], [], []>} : vector<2x128xbf16>, vector<128x128xbf16>, vector<2x128xf32> -> vector<2x128xf32>
      %cst_16 = arith.constant dense<0.000000e+00> : vector<128xf32>
      %23 = vector.multi_reduction <add>, %22, %cst_16 [0] : vector<2x128xf32> to vector<128xf32>
      %24 = vector.shape_cast %23 : vector<128xf32> to vector<1x128xf32>
      %cst_17 = arith.constant 2.000000e+00 : f32
      %25 = vector.broadcast %cst_17 : f32 to vector<1x128xf32>
      %26 = arith.divf %24, %25 : vector<1x128xf32>
      %27 = vector.broadcast %26 : vector<1x128xf32> to vector<2x128xf32>
      %28 = arith.subf %22, %27 : vector<2x128xf32>
      %29 = arith.mulf %28, %28 : vector<2x128xf32>
      %cst_18 = arith.constant dense<0.000000e+00> : vector<128xf32>
      %30 = vector.multi_reduction <add>, %29, %cst_18 [0] : vector<2x128xf32> to vector<128xf32>
      %31 = vector.shape_cast %30 : vector<128xf32> to vector<1x128xf32>
      %cst_19 = arith.constant 2.000000e+00 : f32
      %32 = vector.broadcast %cst_19 : f32 to vector<1x128xf32>
      %33 = arith.divf %31, %32 : vector<1x128xf32>
      %cst_20 = arith.constant 9.99999974E-6 : f32
      %34 = vector.broadcast %cst_20 : f32 to vector<1x128xf32>
      %35 = arith.addf %33, %34 : vector<1x128xf32>
      %36 = math.rsqrt %35 : vector<1x128xf32>
      %37 = vector.broadcast %36 : vector<1x128xf32> to vector<2x128xf32>
      %38 = arith.mulf %28, %37 : vector<2x128xf32>
      %39 = vector.broadcast %15 : vector<1x128xf32> to vector<2x128xf32>
      %40 = arith.mulf %38, %39 : vector<2x128xf32>
      %41 = vector.broadcast %16 : vector<1x128xf32> to vector<2x128xf32>
      %42 = arith.addf %40, %41 : vector<2x128xf32>
      %cst_21 = arith.constant 0.000000e+00 : f32
      %43 = vector.broadcast %cst_21 : f32 to vector<2x128xf32>
      %44 = arith.maximumf %42, %43 : vector<2x128xf32>
      %45 = arith.truncf %44 : vector<2x128xf32> to vector<2x128xbf16>
      %c0_22 = arith.constant 0 : index
      %c0_23 = arith.constant 0 : index
      %46 = vector.load %arg4[%c0_22, %c0_23] : memref<128x64xbf16, #tpu.memory_space<vmem>>, vector<128x64xbf16>
      %cst_24 = arith.constant dense<0.000000e+00> : vector<2x64xf32>
      %47 = tpu.matmul %45, %46, %cst_24 {dimension_numbers = #tpu.dot_dimension_numbers<[1], [0], [0], [1], [0, 0, 1, 1], [], []>} : vector<2x128xbf16>, vector<128x64xbf16>, vector<2x64xf32> -> vector<2x64xf32>
      %cst_25 = arith.constant dense<0.000000e+00> : vector<64xf32>
      %48 = vector.multi_reduction <add>, %47, %cst_25 [0] : vector<2x64xf32> to vector<64xf32>
      %49 = vector.shape_cast %48 : vector<64xf32> to vector<1x64xf32>
      %cst_26 = arith.constant 2.000000e+00 : f32
      %50 = vector.broadcast %cst_26 : f32 to vector<1x64xf32>
      %51 = arith.divf %49, %50 : vector<1x64xf32>
      %52 = vector.broadcast %51 : vector<1x64xf32> to vector<2x64xf32>
      %53 = arith.subf %47, %52 : vector<2x64xf32>
      %54 = arith.mulf %53, %53 : vector<2x64xf32>
      %cst_27 = arith.constant dense<0.000000e+00> : vector<64xf32>
      %55 = vector.multi_reduction <add>, %54, %cst_27 [0] : vector<2x64xf32> to vector<64xf32>
      %56 = vector.shape_cast %55 : vector<64xf32> to vector<1x64xf32>
      %cst_28 = arith.constant 2.000000e+00 : f32
      %57 = vector.broadcast %cst_28 : f32 to vector<1x64xf32>
      %58 = arith.divf %56, %57 : vector<1x64xf32>
      %cst_29 = arith.constant 9.99999974E-6 : f32
      %59 = vector.broadcast %cst_29 : f32 to vector<1x64xf32>
      %60 = arith.addf %58, %59 : vector<1x64xf32>
      %61 = math.rsqrt %60 : vector<1x64xf32>
      %62 = vector.broadcast %61 : vector<1x64xf32> to vector<2x64xf32>
      %63 = arith.mulf %53, %62 : vector<2x64xf32>
      %64 = vector.broadcast %17 : vector<1x64xf32> to vector<2x64xf32>
      %65 = arith.mulf %63, %64 : vector<2x64xf32>
      %66 = vector.broadcast %18 : vector<1x64xf32> to vector<2x64xf32>
      %67 = arith.addf %65, %66 : vector<2x64xf32>
      %cst_30 = arith.constant 0.000000e+00 : f32
      %68 = vector.broadcast %cst_30 : f32 to vector<2x64xf32>
      %69 = arith.maximumf %67, %68 : vector<2x64xf32>
      %70 = arith.truncf %69 : vector<2x64xf32> to vector<2x64xbf16>
      %c0_31 = arith.constant 0 : index
      %c0_32 = arith.constant 0 : index
      %71 = vector.load %arg5[%c0_31, %c0_32] : memref<64x128xbf16, #tpu.memory_space<vmem>>, vector<64x128xbf16>
      %cst_33 = arith.constant dense<0.000000e+00> : vector<2x128xf32>
      %72 = tpu.matmul %70, %71, %cst_33 {dimension_numbers = #tpu.dot_dimension_numbers<[1], [0], [0], [1], [0, 0, 1, 1], [], []>} : vector<2x64xbf16>, vector<64x128xbf16>, vector<2x128xf32> -> vector<2x128xf32>
      %73 = vector.broadcast %19 : vector<1x128xf32> to vector<2x128xf32>
      %74 = arith.addf %72, %73 : vector<2x128xf32>
      %c0_34 = arith.constant 0 : index
      %c0_35 = arith.constant 0 : index
      %75 = vector.load %arg7[%c0_34, %c0_35] : memref<2x128xf32, #tpu.memory_space<vmem>>, vector<2x128xf32>
      tpu.vector_store %arg7[%c0_34, %c0_35], %74 {strides = array<i32>} : memref<2x128xf32, #tpu.memory_space<vmem>>, vector<2x128xf32>,
    } else {
    }
    return
  }
  func.func @transform_0(%arg0: i32) -> (i32, i32) {
    %c0_i32 = arith.constant 0 : i32
    %c0_i32_0 = arith.constant 0 : i32
    return %c0_i32, %arg0 : i32, i32
  }
  func.func @transform_1(%arg0: i32) -> (i32, i32) {
    %c0_i32 = arith.constant 0 : i32
    %c0_i32_0 = arith.constant 0 : i32
    return %arg0, %c0_i32 : i32, i32
  }
  func.func @transform_2(%arg0: i32) -> (i32, i32) {
    %c0_i32 = arith.constant 0 : i32
    %c0_i32_0 = arith.constant 0 : i32
    %c0_i32_1 = arith.constant 0 : i32
    return %c0_i32, %c0_i32_0 : i32, i32
  }
  func.func @transform_3(%arg0: i32) -> (i32, i32) {
    %c0_i32 = arith.constant 0 : i32
    %c0_i32_0 = arith.constant 0 : i32
    %c0_i32_1 = arith.constant 0 : i32
    return %c0_i32, %c0_i32_0 : i32, i32
  }
  func.func @transform_4(%arg0: i32) -> (i32, i32) {
    %c0_i32 = arith.constant 0 : i32
    %c0_i32_0 = arith.constant 0 : i32
    %c0_i32_1 = arith.constant 0 : i32
    return %c0_i32, %c0_i32_0 : i32, i32
  }
  func.func @transform_5(%arg0: i32) -> (i32, i32) {
    %c0_i32 = arith.constant 0 : i32
    %c0_i32_0 = arith.constant 0 : i32
    %c0_i32_1 = arith.constant 0 : i32
    return %c0_i32, %c0_i32_0 : i32, i32
  }
  func.func @transform_6(%arg0: i32) -> (i32, i32) {
    %c0_i32 = arith.constant 0 : i32
    %c0_i32_0 = arith.constant 0 : i32
    %c0_i32_1 = arith.constant 0 : i32
    return %c0_i32, %c0_i32_0 : i32, i32
  }
}

</mosaic_0001>

<llo_original>
// kernel: res_tn_f_forward.1
$region0: #{res_tn_f_forward.1}
  #allocation0 [shape = 'u32[]', space=smem, size = 0x4, offset = 0x4, fixed_abs, tag = 'smem constant byte address 0x4 - core index']
  #allocation1 [shape = 'u32[144,128]{1,0:T(1,128)}', space=vmem, size = 0x12000, scoped, tag = 'internal scratch']
  #allocation2 [shape = 'f32[2,128]{1,0:T(2,128)}', space=vmem, size = 0x400, scoped, tag = 'scratch operand']
  %s0 = inlined_call_operand.vmem [shape: f32[2,768], index: 0, kind: input, shape index: {}]
  %s1 = inlined_call_operand.hbm [shape: bf16[1024,128], index: 1, kind: input, shape index: {}]
  %s2 = inlined_call_operand.vmem [shape: bf16[128,128], index: 2, kind: input, shape index: {}]
  %s3 = inlined_call_operand.vmem [shape: bf16[128,64], index: 3, kind: input, shape index: {}]
  %s4 = inlined_call_operand.vmem [shape: bf16[64,128], index: 4, kind: input, shape index: {}]
  %s5 = inlined_call_operand.vmem [shape: f32[5,128], index: 5, kind: input, shape index: {}]
  %s6 = inlined_call_operand.hbm [shape: f32[2,128], index: 6, kind: output, shape index: {}]
  %s7 = sld [smem:[#allocation0]]
  $region69: #{res_tn_f_forward.1} parent=0
    _
  %s9 = ssub.s32 1, %s7
  %s10 = scalar_select 0, %s9, %s7
  $region1: #{res_tn_f_forward.1} parent=0
    #allocation3 [shape = 'u8[196608]{0}', space=vmem, size = 0x30000, scoped, tag = 'input window, operand 1']
    #allocation4 [shape = 's32[2]{0}', space=sflag, size = 0x8, scoped, tag = 'scoped memory for res_tn_f_forward.1']
    #allocation5 [shape = 's32[2]{0}', space=sflag, size = 0x8, scoped, tag = 'scoped memory for res_tn_f_forward.1']
    #allocation6 [shape = 'u8[1024]{0}', space=vmem, size = 0x400, scoped, tag = 'output window, operand 0, single buffered']
    %11 = vsyncpa [#allocation4], 0
    %s12 = scalar_lea.sflag [#allocation4], 1
    %13 = vsyncpa %s12, 0
    %14 = vsyncpa [#allocation5], 0
    loop: start=0, step=1, limit=4
    $region2: #{res_tn_f_forward.1} parent=1 // loop_pre_header
      _
    $region3: #{res_tn_f_forward.1} parent=1 // loop_header
      %s16 = sphi 0, %s20
      %p17 = scmp.ge.s32.totalorder %s16, 4
      %s26 = sphi 0, %s28
      %s29 = sphi 0, %s26
      %s30 = sphi 0, %s29
      %s46 = sphi 0, %s30
      %s52 = sphi 0, %s54
      %s55 = sphi 0, %s52
      %s56 = sphi 0, %s55
      %s72 = sphi 0, %s56
      %s76 = sphi 0, %s76
      %s78 = sphi 0, %s76
      %s79 = sphi 0, %s78
      %s93 = sphi 0, %s79
      %s97 = sphi 0, %s97
      %s99 = sphi 0, %s97
      %s100 = sphi 0, %s99
      %s114 = sphi 0, %s100
      %s118 = sphi 0, %s118
      %s120 = sphi 0, %s118
      %s121 = sphi 0, %s120
      %s135 = sphi 0, %s121
      %s139 = sphi 0, %s139
      %s141 = sphi 0, %s139
      %s142 = sphi 0, %s141
      %s156 = sphi 0, %s142
      %s160 = sphi 0, %s160
      %s162 = sphi 0, %s160
      %s163 = sphi 0, %s162
      %s177 = sphi 0, %s163
    $region4: #{res_tn_f_forward.1} parent=1 // loop_header_branch
      %19 = sbr.rel (%p17) target = $region8
    $region5: #{res_tn_f_forward.1} parent=1 // loop_body
      %s21 = ssub.s32 %s16, 1
      %s22 = ssub.s32 %s16, 2
      %s23 = sadd.s32 %s16, 1
      %s24 = ssub.s32 %s16, %s23
      %p25 = scmp.eq.s32.totalorder %s24, 0
      %s27 = sadd.s32 %s26, 1
      %s28 = scalar_select %p25, %s26, %s27
      %p31 = pneg %p25
      %p32 = scmp.eq.s32.totalorder %s16, 1
      %p33 = por %p31, %p32
      %p34 = scmp.ne.s32.totalorder %s26, %s29
      %p35 = scmp.eq.s32.totalorder %s16, 0
      %p36 = por %p34, %p35
      %p37 = scmp.ne.s32.totalorder %s26, %s29
      %p38 = scmp.eq.s32.totalorder %s21, 1
      %p39 = por %p37, %p38
      %p40 = scmp.ne.s32.totalorder %s29, %s30
      %p41 = scmp.eq.s32.totalorder %s21, 0
      %p42 = por %p40, %p41
      %p43 = scmp.ne.s32.totalorder %s29, %s30
      %p44 = scmp.eq.s32.totalorder %s22, 1
      %p45 = por %p43, %p44
      %p47 = scmp.ne.s32.totalorder %s30, %s46
      %p48 = scmp.eq.s32.totalorder %s22, 0
      %p49 = por %p47, %p48
      %s50 = ssub.s32 %s16, %s23
      %p51 = scmp.eq.s32.totalorder %s50, 0
      %s53 = sadd.s32 %s52, 1
      %s54 = scalar_select %p51, %s52, %s53
      %p57 = pneg %p51
      %p58 = scmp.eq.s32.totalorder %s16, 1
      %p59 = por %p57, %p58
      %p60 = scmp.ne.s32.totalorder %s52, %s55
      %p61 = scmp.eq.s32.totalorder %s16, 0
      %p62 = por %p60, %p61
      %p63 = scmp.ne.s32.totalorder %s52, %s55
      %p64 = scmp.eq.s32.totalorder %s21, 1
      %p65 = por %p63, %p64
      %p66 = scmp.ne.s32.totalorder %s55, %s56
      %p67 = scmp.eq.s32.totalorder %s21, 0
      %p68 = por %p66, %p67
      %p69 = scmp.ne.s32.totalorder %s55, %s56
      %p70 = scmp.eq.s32.totalorder %s22, 1
      %p71 = por %p69, %p70
      %p73 = scmp.ne.s32.totalorder %s56, %s72
      %p74 = scmp.eq.s32.totalorder %s22, 0
      %p75 = por %p73, %p74
      %s77 = sadd.s32 %s76, 1
      %p80 = scmp.eq.s32.totalorder %s16, 1
      %p81 = scmp.ne.s32.totalorder %s76, %s78
      %p82 = scmp.eq.s32.totalorder %s16, 0
      %p83 = por %p81, %p82
      %p84 = scmp.ne.s32.totalorder %s76, %s78
      %p85 = scmp.eq.s32.totalorder %s21, 1
      %p86 = por %p84, %p85
      %p87 = scmp.ne.s32.totalorder %s78, %s79
      %p88 = scmp.eq.s32.totalorder %s21, 0
      %p89 = por %p87, %p88
      %p90 = scmp.ne.s32.totalorder %s78, %s79
      %p91 = scmp.eq.s32.totalorder %s22, 1
      %p92 = por %p90, %p91
      %p94 = scmp.ne.s32.totalorder %s79, %s93
      %p95 = scmp.eq.s32.totalorder %s22, 0
      %p96 = por %p94, %p95
      %s98 = sadd.s32 %s97, 1
      %p101 = scmp.eq.s32.totalorder %s16, 1
      %p102 = scmp.ne.s32.totalorder %s97, %s99
      %p103 = scmp.eq.s32.totalorder %s16, 0
      %p104 = por %p102, %p103
      %p105 = scmp.ne.s32.totalorder %s97, %s99
      %p106 = scmp.eq.s32.totalorder %s21, 1
      %p107 = por %p105, %p106
      %p108 = scmp.ne.s32.totalorder %s99, %s100
      %p109 = scmp.eq.s32.totalorder %s21, 0
      %p110 = por %p108, %p109
      %p111 = scmp.ne.s32.totalorder %s99, %s100
      %p112 = scmp.eq.s32.totalorder %s22, 1
      %p113 = por %p111, %p112
      %p115 = scmp.ne.s32.totalorder %s100, %s114
      %p116 = scmp.eq.s32.totalorder %s22, 0
      %p117 = por %p115, %p116
      %s119 = sadd.s32 %s118, 1
      %p122 = scmp.eq.s32.totalorder %s16, 1
      %p123 = scmp.ne.s32.totalorder %s118, %s120
      %p124 = scmp.eq.s32.totalorder %s16, 0
      %p125 = por %p123, %p124
      %p126 = scmp.ne.s32.totalorder %s118, %s120
      %p127 = scmp.eq.s32.totalorder %s21, 1
      %p128 = por %p126, %p127
      %p129 = scmp.ne.s32.totalorder %s120, %s121
      %p130 = scmp.eq.s32.totalorder %s21, 0
      %p131 = por %p129, %p130
      %p132 = scmp.ne.s32.totalorder %s120, %s121
      %p133 = scmp.eq.s32.totalorder %s22, 1
      %p134 = por %p132, %p133
      %p136 = scmp.ne.s32.totalorder %s121, %s135
      %p137 = scmp.eq.s32.totalorder %s22, 0
      %p138 = por %p136, %p137
      %s140 = sadd.s32 %s139, 1
      %p143 = scmp.eq.s32.totalorder %s16, 1
      %p144 = scmp.ne.s32.totalorder %s139, %s141
      %p145 = scmp.eq.s32.totalorder %s16, 0
      %p146 = por %p144, %p145
      %p147 = scmp.ne.s32.totalorder %s139, %s141
      %p148 = scmp.eq.s32.totalorder %s21, 1
      %p149 = por %p147, %p148
      %p150 = scmp.ne.s32.totalorder %s141, %s142
      %p151 = scmp.eq.s32.totalorder %s21, 0
      %p152 = por %p150, %p151
      %p153 = scmp.ne.s32.totalorder %s141, %s142
      %p154 = scmp.eq.s32.totalorder %s22, 1
      %p155 = por %p153, %p154
      %p157 = scmp.ne.s32.totalorder %s142, %s156
      %p158 = scmp.eq.s32.totalorder %s22, 0
      %p159 = por %p157, %p158
      %s161 = sadd.s32 %s160, 1
      %p164 = scmp.eq.s32.totalorder %s16, 1
      %p165 = scmp.ne.s32.totalorder %s160, %s162
      %p166 = scmp.eq.s32.totalorder %s16, 0
      %p167 = por %p165, %p166
      %p168 = scmp.ne.s32.totalorder %s160, %s162
      %p169 = scmp.eq.s32.totalorder %s21, 1
      %p170 = por %p168, %p169
      %p171 = scmp.ne.s32.totalorder %s162, %s163
      %p172 = scmp.eq.s32.totalorder %s21, 0
      %p173 = por %p171, %p172
      %p174 = scmp.ne.s32.totalorder %s162, %s163
      %p175 = scmp.eq.s32.totalorder %s22, 1
      %p176 = por %p174, %p175
      %p178 = scmp.ne.s32.totalorder %s163, %s177
      %p179 = scmp.eq.s32.totalorder %s22, 0
      %p180 = por %p178, %p179
      %p181 = scmp.le.s32.totalorder 1, %s16
      %p182 = scmp.lt.s32.totalorder %s16, 3
      %p183 = pnand %p181, %p182
      %p184 = pneg %p183
      // Predicated region
      $region9: #{res_tn_f_forward.1} parent=5 // pred_check
        _
      $region10: #{res_tn_f_forward.1} parent=5 // pred_check_branch
        %186 = sbr.rel (%p183) target = $region12
      $region11: #{res_tn_f_forward.1} parent=5 // pred_region
        %s187 = ssub.s32 %s16, 1
        // Predicated region
        $region13: #{res_tn_f_forward.1} parent=11 // pred_check
          %p188 = pneg %p89
        $region14: #{res_tn_f_forward.1} parent=11 // pred_check_branch
          %190 = sbr.rel (%p188) target = $region16
        $region15: #{res_tn_f_forward.1} parent=11 // pred_region
          _
        $region16: #{res_tn_f_forward.1} parent=11 // pred_fallthru
          _
        // Predicated region
        $region17: #{res_tn_f_forward.1} parent=11 // pred_check
          %p191 = pneg %p110
        $region18: #{res_tn_f_forward.1} parent=11 // pred_check_branch
          %193 = sbr.rel (%p191) target = $region20
        $region19: #{res_tn_f_forward.1} parent=11 // pred_region
          _
        $region20: #{res_tn_f_forward.1} parent=11 // pred_fallthru
          _
        // Predicated region
        $region21: #{res_tn_f_forward.1} parent=11 // pred_check
          %p194 = pneg %p131
        $region22: #{res_tn_f_forward.1} parent=11 // pred_check_branch
          %196 = sbr.rel (%p194) target = $region24
        $region23: #{res_tn_f_forward.1} parent=11 // pred_region
          _
        $region24: #{res_tn_f_forward.1} parent=11 // pred_fallthru
          _
        // Predicated region
        $region25: #{res_tn_f_forward.1} parent=11 // pred_check
          %p197 = pneg %p152
        $region26: #{res_tn_f_forward.1} parent=11 // pred_check_branch
          %199 = sbr.rel (%p197) target = $region28
        $region27: #{res_tn_f_forward.1} parent=11 // pred_region
          _
        $region28: #{res_tn_f_forward.1} parent=11 // pred_fallthru
          _
      $region12: #{res_tn_f_forward.1} parent=5 // pred_fallthru
        _
      %p200 = scmp.lt.s32.totalorder %s16, 2
      // Predicated region
      $region29: #{res_tn_f_forward.1} parent=5 // pred_check
        %p201 = pneg %p200
      $region30: #{res_tn_f_forward.1} parent=5 // pred_check_branch
        %203 = sbr.rel (%p201) target = $region32
      $region31: #{res_tn_f_forward.1} parent=5 // pred_region
        // Predicated region
        $region33: #{res_tn_f_forward.1} parent=31 // pred_check
          %p204 = pneg %p36
        $region34: #{res_tn_f_forward.1} parent=31 // pred_check_branch
          %206 = sbr.rel (%p204) target = $region36
        $region35: #{res_tn_f_forward.1} parent=31 // pred_region
          %s207 = smul.u32 3, %s16
          %p208 = scmp.lt.s32.totalorder %s207, 5
          %s209 = scalar_select %p208, %s207, 5
          %s210 = smul.addr %s209, 2
          %s211 = scalar_lea.vmem %s0, %s210
          %s212 = smul.u32 3, %s16
        $region36: #{res_tn_f_forward.1} parent=31 // pred_fallthru
          _
        // Predicated region
        $region37: #{res_tn_f_forward.1} parent=31 // pred_check
          %p213 = pneg %p62
        $region38: #{res_tn_f_forward.1} parent=31 // pred_check_branch
          %215 = sbr.rel (%p213) target = $region40
        $region39: #{res_tn_f_forward.1} parent=31 // pred_region
          %s216 = sand.u32 %s52, 1
          %s217 = scalar_lea.sflag [#allocation4], %s216
          %s218 = sand.u32 %s52, 1
          %s219 = smul.addr %s218, 192
          %s220 = scalar_lea.vmem [#allocation3], %s219
          %s221 = smul.u32 48, %s16
          %s222 = ssub.s32 128, %s221
          %p223 = scmp.lt.s32.totalorder %s222, 48
          %s224 = scalar_select %p223, %s222, 48
          %s225 = smul.u32 64, %s224
          %s227 = ssub.s32 3072, %s225
          %228 = vsyncadd %s217, %s227
          %p229 = scmp.ne.s32.totalorder 0, %s225
          %s230 = smul.addr %s221, 64
          %s231 = scalar_lea.hbm %s1, %s230
          %s232 = smul.u32 4, %s224
          %s233 = sshll.u32 %s220, 4
          %s234 = int_to_ptr.vmem [resolvable:$true] %s233
          %s235 = sshll.u32 %s232, 4
          %239 = dma.hbm_to_vmem [thread:$0]  (%p229), %s231, %s235, %s234, %s217, 64, 64, 4
        $region40: #{res_tn_f_forward.1} parent=31 // pred_fallthru
          _
      $region32: #{res_tn_f_forward.1} parent=5 // pred_fallthru
        _
      %p240 = scmp.le.s32.totalorder 1, %s16
      %p241 = scmp.lt.s32.totalorder %s16, 3
      %p242 = pnand %p240, %p241
      %p243 = pneg %p242
      // Predicated region
      $region41: #{res_tn_f_forward.1} parent=5 // pred_check
        _
      $region42: #{res_tn_f_forward.1} parent=5 // pred_check_branch
        %245 = sbr.rel (%p242) target = $region44
      $region43: #{res_tn_f_forward.1} parent=5 // pred_region
        %s246 = ssub.s32 %s16, 1
        %s247 = sand.u32 %s55, 1
        %s248 = scalar_lea.sflag [#allocation4], %s247
        %s249 = sand.u32 %s55, 1
        %s250 = smul.addr %s249, 192
        %s251 = scalar_lea.vmem [#allocation3], %s250
        // Predicated region
        $region45: #{res_tn_f_forward.1} parent=43 // pred_check
          %p252 = pneg %p68
        $region46: #{res_tn_f_forward.1} parent=43 // pred_check_branch
          %254 = sbr.rel (%p252) target = $region48
        $region47: #{res_tn_f_forward.1} parent=43 // pred_region
          %255 = dma.done %s248, 3072
        $region48: #{res_tn_f_forward.1} parent=43 // pred_fallthru
          _
        %s256 = smul.u32 3, %s21
        %p257 = scmp.lt.s32.totalorder %s256, 5
        %s258 = scalar_select %p257, %s256, 5
        %s259 = smul.addr %s258, 2
        %s260 = scalar_lea.vmem %s0, %s259
        %p261 = pneg %p42
        %p262 = pneg %p39
        %s263 = sand.u32 %s55, 1
        %s264 = scalar_lea.sflag [#allocation4], %s263
        %s265 = sand.u32 %s55, 1
        %s266 = smul.addr %s265, 192
        %s267 = scalar_lea.vmem [#allocation3], %s266
        %p268 = pneg %p68
        %p269 = pneg %p65
        %p270 = pneg %p89
        %p271 = pneg %p86
        %p272 = pneg %p110
        %p273 = pneg %p107
        %p274 = pneg %p131
        %p275 = pneg %p128
        %p276 = pneg %p152
        %p277 = pneg %p149
        %p278 = pneg %p173
        %p279 = pneg %p170
        %s280 = smul.u32 3, %s21
        %p281 = scmp.lt.s32.totalorder %s280, 5
        %s282 = scalar_select %p281, %s280, 5
        %s283 = smul.addr %s282, 2
        %s284 = scalar_lea.vmem %s0, %s283
        %s285 = smul.u32 3, %s21
        %s286 = smul.u32 48, %s21
        %s287 = ssub.s32 128, %s286
        %p288 = scmp.lt.s32.totalorder %s287, 48
        %s289 = scalar_select %p288, %s287, 48
        %s290 = smul.u32 64, %s289
        %p292 = scmp.eq.s32.totalorder %s21, 0
        // Predicated region
        $region49: #{res_tn_f_forward.1} parent=43 // pred_check
          %p293 = pneg %p292
        $region50: #{res_tn_f_forward.1} parent=43 // pred_check_branch
          %295 = sbr.rel (%p293) target = $region52
        $region51: #{res_tn_f_forward.1} parent=43 // pred_region
          %296 = vst [vmem:[#allocation2] sm:$0x3] 0.0
        $region52: #{res_tn_f_forward.1} parent=43 // pred_fallthru
          _
        %v297 = vld [vmem:[%s284] sm:$0x3f]
        %v298 = vld [vmem:[#allocation2] sm:$0x3]
        %v300 = vcombine.high %v297, %v297
        %v302 = vunpack.c.l.s4 1983009808
        %v303 = vunpack.c.0.s8 %v302
        %v304 = vlaneseq
        %v305 = vshrl.u32 %v304, 7
        %v306 = vsub.s32 %v303, %v305
        %v307 = vrot.slane %v297, %v306
        %v309 = vunpack.c.l.s4 1983009808
        %v310 = vunpack.c.0.s8 %v309
        %v311 = vlaneseq
        %v312 = vshrl.u32 %v311, 7
        %v313 = vsub.s32 %v310, %v312
        %v314 = vrot.slane %v300, %v313
        %v315 = vcombine.high %v307, %v307
        %v319 = vpack.c.bf16 %v307, %v307
        %v320 = vpack.c.bf16 %v315, %v315
        %v321 = vpack.c.bf16 %v314, %v314
        %v322 = vld [vmem:[%s251] sm:$0xf]
        %v323 = vld [vmem:[%s251 + $0x4] sm:$0xf]
        %v324 = vld [vmem:[%s251 + $0x8] sm:$0xf]
        %v325 = vld [vmem:[%s251 + $0xc] sm:$0xf]
        %v326 = vld [vmem:[%s251 + $0x10] sm:$0xf]
        %v327 = vld [vmem:[%s251 + $0x14] sm:$0xf]
        %v328 = vld [vmem:[%s251 + $0x18] sm:$0xf]
        %v329 = vld [vmem:[%s251 + $0x1c] sm:$0xf]
        %v330 = vld [vmem:[%s251 + $0x20] sm:$0xf]
        %v331 = vld [vmem:[%s251 + $0x24] sm:$0xf]
        %v332 = vld [vmem:[%s251 + $0x28] sm:$0xf]
        %v333 = vld [vmem:[%s251 + $0x2c] sm:$0xf]
        %v334 = vld [vmem:[%s251 + $0x30] sm:$0xf]
        %v335 = vld [vmem:[%s251 + $0x34] sm:$0xf]
        %v336 = vld [vmem:[%s251 + $0x38] sm:$0xf]
        %v337 = vld [vmem:[%s251 + $0x3c] sm:$0xf]
        %v338 = vld [vmem:[%s251 + $0x40] sm:$0xf]
        %v339 = vld [vmem:[%s251 + $0x44] sm:$0xf]
        %v340 = vld [vmem:[%s251 + $0x48] sm:$0xf]
        %v341 = vld [vmem:[%s251 + $0x4c] sm:$0xf]
        %v342 = vld [vmem:[%s251 + $0x50] sm:$0xf]
        %v343 = vld [vmem:[%s251 + $0x54] sm:$0xf]
        %v344 = vld [vmem:[%s251 + $0x58] sm:$0xf]
        %v345 = vld [vmem:[%s251 + $0x5c] sm:$0xf]
        %v346 = vld [vmem:[%s251 + $0x60] sm:$0xf]
        %v347 = vld [vmem:[%s251 + $0x64] sm:$0xf]
        %v348 = vld [vmem:[%s251 + $0x68] sm:$0xf]
        %v349 = vld [vmem:[%s251 + $0x6c] sm:$0xf]
        %v350 = vld [vmem:[%s251 + $0x70] sm:$0xf]
        %v351 = vld [vmem:[%s251 + $0x74] sm:$0xf]
        %v352 = vld [vmem:[%s251 + $0x78] sm:$0xf]
        %v353 = vld [vmem:[%s251 + $0x7c] sm:$0xf]
        %v354 = vld [vmem:[%s251 + $0x80] sm:$0xf]
        %v355 = vld [vmem:[%s251 + $0x84] sm:$0xf]
        %v356 = vld [vmem:[%s251 + $0x88] sm:$0xf]
        %v357 = vld [vmem:[%s251 + $0x8c] sm:$0xf]
        %v358 = vld [vmem:[%s251 + $0x90] sm:$0xf]
        %v359 = vld [vmem:[%s251 + $0x94] sm:$0xf]
        %v360 = vld [vmem:[%s251 + $0x98] sm:$0xf]
        %v361 = vld [vmem:[%s251 + $0x9c] sm:$0xf]
        %v362 = vld [vmem:[%s251 + $0xa0] sm:$0xf]
        %v363 = vld [vmem:[%s251 + $0xa4] sm:$0xf]
        %v364 = vld [vmem:[%s251 + $0xa8] sm:$0xf]
        %v365 = vld [vmem:[%s251 + $0xac] sm:$0xf]
        %v366 = vld [vmem:[%s251 + $0xb0] sm:$0xf]
        %v367 = vld [vmem:[%s251 + $0xb4] sm:$0xf]
        %v368 = vld [vmem:[%s251 + $0xb8] sm:$0xf]
        %v369 = vld [vmem:[%s251 + $0xbc] sm:$0xf]
        %v418 = vunpack.c.l.b16 %v322
        %v419 = vunpack.c.l.b16 %v323
        %v420 = vunpack.c.l.b16 %v324
        %v421 = vunpack.c.l.b16 %v325
        %v422 = vunpack.c.l.b16 %v326
        %v423 = vunpack.c.l.b16 %v327
        %v424 = vunpack.c.l.b16 %v328
        %v425 = vunpack.c.l.b16 %v329
        %v426 = vunpack.c.l.b16 %v330
        %v427 = vunpack.c.l.b16 %v331
        %v428 = vunpack.c.l.b16 %v332
        %v429 = vunpack.c.l.b16 %v333
        %v430 = vunpack.c.l.b16 %v334
        %v431 = vunpack.c.l.b16 %v335
        %v432 = vunpack.c.l.b16 %v336
        %v433 = vunpack.c.l.b16 %v337
        %v434 = vunpack.c.l.b16 %v338
        %v435 = vunpack.c.l.b16 %v339
        %v436 = vunpack.c.l.b16 %v340
        %v437 = vunpack.c.l.b16 %v341
        %v438 = vunpack.c.l.b16 %v342
        %v439 = vunpack.c.l.b16 %v343
        %v440 = vunpack.c.l.b16 %v344
        %v441 = vunpack.c.l.b16 %v345
        %v442 = vunpack.c.l.b16 %v346
        %v443 = vunpack.c.l.b16 %v347
        %v444 = vunpack.c.l.b16 %v348
        %v445 = vunpack.c.l.b16 %v349
        %v446 = vunpack.c.l.b16 %v350
        %v447 = vunpack.c.l.b16 %v351
        %v448 = vunpack.c.l.b16 %v352
        %v449 = vunpack.c.l.b16 %v353
        %v450 = vunpack.c.l.b16 %v354
        %v451 = vunpack.c.l.b16 %v355
        %v452 = vunpack.c.l.b16 %v356
        %v453 = vunpack.c.l.b16 %v357
        %v454 = vunpack.c.l.b16 %v358
        %v455 = vunpack.c.l.b16 %v359
        %v456 = vunpack.c.l.b16 %v360
        %v457 = vunpack.c.l.b16 %v361
        %v458 = vunpack.c.l.b16 %v362
        %v459 = vunpack.c.l.b16 %v363
        %v460 = vunpack.c.l.b16 %v364
        %v461 = vunpack.c.l.b16 %v365
        %v462 = vunpack.c.l.b16 %v366
        %v463 = vunpack.c.l.b16 %v367
        %v464 = vunpack.c.l.b16 %v368
        %v465 = vunpack.c.l.b16 %v369
        %v466 = vpack.c.b16 %v419, %v418
        %v467 = vpack.c.b16 %v421, %v420
        %v468 = vpack.c.b16 %v423, %v422
        %v469 = vpack.c.b16 %v425, %v424
        %v470 = vpack.c.b16 %v427, %v426
        %v471 = vpack.c.b16 %v429, %v428
        %v472 = vpack.c.b16 %v431, %v430
        %v473 = vpack.c.b16 %v433, %v432
        %v474 = vpack.c.b16 %v435, %v434
        %v475 = vpack.c.b16 %v437, %v436
        %v476 = vpack.c.b16 %v439, %v438
        %v477 = vpack.c.b16 %v441, %v440
        %v478 = vpack.c.b16 %v443, %v442
        %v479 = vpack.c.b16 %v445, %v444
        %v480 = vpack.c.b16 %v447, %v446
        %v481 = vpack.c.b16 %v449, %v448
        %v482 = vpack.c.b16 %v451, %v450
        %v483 = vpack.c.b16 %v453, %v452
        %v484 = vpack.c.b16 %v455, %v454
        %v485 = vpack.c.b16 %v457, %v456
        %v486 = vpack.c.b16 %v459, %v458
        %v487 = vpack.c.b16 %v461, %v460
        %v488 = vpack.c.b16 %v463, %v462
        %v489 = vpack.c.b16 %v465, %v464
        %514 = vmatprep.subr.bf16.mxu0 0
        %515 = vmatpush1.bf16.msra.mxu0 %v466
        %516 = vmatprep.subr.bf16.mxu0 0
        %517 = vmatpush1.bf16.msra.mxu0 %v467
        %518 = vmatprep.subr.bf16.mxu0 0
        %519 = vmatpush1.bf16.msra.mxu0 %v468
        %520 = vmatprep.subr.bf16.mxu0 0
        %521 = vmatpush1.bf16.msra.mxu0 %v469
        %522 = vmatprep.subr.bf16.mxu0 0
        %523 = vmatpush1.bf16.msra.mxu0 %v470
        %524 = vmatprep.subr.bf16.mxu0 0
        %525 = vmatpush1.bf16.msra.mxu0 %v471
        %526 = vmatprep.subr.bf16.mxu0 0
        %527 = vmatpush1.bf16.msra.mxu0 %v472
        %528 = vmatprep.subr.bf16.mxu0 0
        %529 = vmatpush1.bf16.msra.mxu0 %v473
        %530 = vmatprep.subr.bf16.mxu0 0
        %531 = vmatpush1.bf16.msra.mxu0 %v474
        %532 = vmatprep.subr.bf16.mxu0 0
        %533 = vmatpush1.bf16.msra.mxu0 %v475
        %534 = vmatprep.subr.bf16.mxu0 0
        %535 = vmatpush1.bf16.msra.mxu0 %v476
        %536 = vmatprep.subr.bf16.mxu0 0
        %537 = vmatpush1.bf16.msra.mxu0 %v477
        %538 = vmatprep.subr.bf16.mxu0 0
        %539 = vmatpush1.bf16.msra.mxu0 %v478
        %540 = vmatprep.subr.bf16.mxu0 0
        %541 = vmatpush1.bf16.msra.mxu0 %v479
        %542 = vmatprep.subr.bf16.mxu0 0
        %543 = vmatpush1.bf16.msra.mxu0 %v480
        %544 = vmatprep.subr.bf16.mxu0 0
        %545 = vmatpush1.bf16.msra.mxu0 %v481
        %546 = vmatprep.mubr.bf16.mxu0 %v320
        %547 = vmatmul.mubr.bf16.gmra.mrb[0].mxu0 %v319
        %v548 = vpop.f32.mrb[0].mxu0
        %v549 = vadd.f32 0.0, %v548
        %v550 = vpop.f32.mrb[0].mxu0
        %v551 = vpop.f32.mrb[0].mxu0
        %v552 = vpop.f32.mrb[0].mxu0
        %553 = vdwg.mxu0
        %554 = vmatprep.subr.bf16.mxu0 0
        %555 = vmatpush1.bf16.msra.mxu0 %v482
        %556 = vmatprep.subr.bf16.mxu0 0
        %557 = vmatpush1.bf16.msra.mxu0 %v483
        %558 = vmatprep.subr.bf16.mxu0 0
        %559 = vmatpush1.bf16.msra.mxu0 %v484
        %560 = vmatprep.subr.bf16.mxu0 0
        %561 = vmatpush1.bf16.msra.mxu0 %v485
        %562 = vmatprep.subr.bf16.mxu0 0
        %563 = vmatpush1.bf16.msra.mxu0 %v486
        %564 = vmatprep.subr.bf16.mxu0 0
        %565 = vmatpush1.bf16.msra.mxu0 %v487
        %566 = vmatprep.subr.bf16.mxu0 0
        %567 = vmatpush1.bf16.msra.mxu0 %v488
        %568 = vmatprep.subr.bf16.mxu0 0
        %569 = vmatpush1.bf16.msra.mxu0 %v489
        %570 = vmatprep.subr.bf16.mxu0 0
        %571 = vmatpush1.bf16.msra.mxu0 0
        %572 = vmatprep.subr.bf16.mxu0 0
        %573 = vmatpush1.bf16.msra.mxu0 0
        %574 = vmatprep.subr.bf16.mxu0 0
        %575 = vmatpush1.bf16.msra.mxu0 0
        %576 = vmatprep.subr.bf16.mxu0 0
        %577 = vmatpush1.bf16.msra.mxu0 0
        %578 = vmatprep.subr.bf16.mxu0 0
        %579 = vmatpush1.bf16.msra.mxu0 0
        %580 = vmatprep.subr.bf16.mxu0 0
        %581 = vmatpush1.bf16.msra.mxu0 0
        %582 = vmatprep.subr.bf16.mxu0 0
        %583 = vmatpush1.bf16.msra.mxu0 0
        %584 = vmatprep.subr.bf16.mxu0 0
        %585 = vmatpush1.bf16.msra.mxu0 0
        %586 = vmatprep.mubr.bf16.mxu0 0
        %587 = vmatmul.mubr.bf16.gmra.mrb[0].mxu0 %v321
        %v588 = vpop.f32.mrb[0].mxu0
        %v589 = vadd.f32 %v549, %v588
        %v590 = vpop.f32.mrb[0].mxu0
        %v591 = vpop.f32.mrb[0].mxu0
        %v592 = vpop.f32.mrb[0].mxu0
        %593 = vdwg.mxu0
        %v594 = vadd.f32 %v298, %v589
        %595 = vst [vmem:[#allocation2] sm:$0x3] %v594
        %p596 = scmp.eq.s32.totalorder %s21, 1
        // Predicated region
        $region53: #{res_tn_f_forward.1} parent=43 // pred_check
          %p597 = pneg %p596
        $region54: #{res_tn_f_forward.1} parent=43 // pred_check_branch
          %599 = sbr.rel (%p597) target = $region56
        $region55: #{res_tn_f_forward.1} parent=43 // pred_region
          %v600 = vld [vmem:[#allocation2] sm:$0x3]
          %v601 = vld [vmem:[%s5] sm:$0x1f]
          %v602 = vpack.c.bf16 %v600, %v600
          %v603 = vld [vmem:[%s2] sm:$0xf]
          %v604 = vld [vmem:[%s2 + $0x4] sm:$0xf]
          %v605 = vld [vmem:[%s2 + $0x8] sm:$0xf]
          %v606 = vld [vmem:[%s2 + $0xc] sm:$0xf]
          %v607 = vld [vmem:[%s2 + $0x10] sm:$0xf]
          %v608 = vld [vmem:[%s2 + $0x14] sm:$0xf]
          %v609 = vld [vmem:[%s2 + $0x18] sm:$0xf]
          %v610 = vld [vmem:[%s2 + $0x1c] sm:$0xf]
          %v611 = vld [vmem:[%s2 + $0x20] sm:$0xf]
          %v612 = vld [vmem:[%s2 + $0x24] sm:$0xf]
          %v613 = vld [vmem:[%s2 + $0x28] sm:$0xf]
          %v614 = vld [vmem:[%s2 + $0x2c] sm:$0xf]
          %v615 = vld [vmem:[%s2 + $0x30] sm:$0xf]
          %v616 = vld [vmem:[%s2 + $0x34] sm:$0xf]
          %v617 = vld [vmem:[%s2 + $0x38] sm:$0xf]
          %v618 = vld [vmem:[%s2 + $0x3c] sm:$0xf]
          %v635 = vunpack.c.l.b16 %v603
          %v636 = vunpack.c.l.b16 %v604
          %v637 = vunpack.c.l.b16 %v605
          %v638 = vunpack.c.l.b16 %v606
          %v639 = vunpack.c.l.b16 %v607
          %v640 = vunpack.c.l.b16 %v608
          %v641 = vunpack.c.l.b16 %v609
          %v642 = vunpack.c.l.b16 %v610
          %v643 = vunpack.c.l.b16 %v611
          %v644 = vunpack.c.l.b16 %v612
          %v645 = vunpack.c.l.b16 %v613
          %v646 = vunpack.c.l.b16 %v614
          %v647 = vunpack.c.l.b16 %v615
          %v648 = vunpack.c.l.b16 %v616
          %v649 = vunpack.c.l.b16 %v617
          %v650 = vunpack.c.l.b16 %v618
          %v651 = vpack.c.b16 %v636, %v635
          %v652 = vpack.c.b16 %v638, %v637
          %v653 = vpack.c.b16 %v640, %v639
          %v654 = vpack.c.b16 %v642, %v641
          %v655 = vpack.c.b16 %v644, %v643
          %v656 = vpack.c.b16 %v646, %v645
          %v657 = vpack.c.b16 %v648, %v647
          %v658 = vpack.c.b16 %v650, %v649
          %667 = vmatprep.subr.bf16.mxu0 0
          %668 = vmatpush1.bf16.msra.mxu0 %v651
          %669 = vmatprep.subr.bf16.mxu0 0
          %670 = vmatpush1.bf16.msra.mxu0 %v652
          %671 = vmatprep.subr.bf16.mxu0 0
          %672 = vmatpush1.bf16.msra.mxu0 %v653
          %673 = vmatprep.subr.bf16.mxu0 0
          %674 = vmatpush1.bf16.msra.mxu0 %v654
          %675 = vmatprep.subr.bf16.mxu0 0
          %676 = vmatpush1.bf16.msra.mxu0 %v655
          %677 = vmatprep.subr.bf16.mxu0 0
          %678 = vmatpush1.bf16.msra.mxu0 %v656
          %679 = vmatprep.subr.bf16.mxu0 0
          %680 = vmatpush1.bf16.msra.mxu0 %v657
          %681 = vmatprep.subr.bf16.mxu0 0
          %682 = vmatpush1.bf16.msra.mxu0 %v658
          %683 = vmatprep.subr.bf16.mxu0 0
          %684 = vmatpush1.bf16.msra.mxu0 0
          %685 = vmatprep.subr.bf16.mxu0 0
          %686 = vmatpush1.bf16.msra.mxu0 0
          %687 = vmatprep.subr.bf16.mxu0 0
          %688 = vmatpush1.bf16.msra.mxu0 0
          %689 = vmatprep.subr.bf16.mxu0 0
          %690 = vmatpush1.bf16.msra.mxu0 0
          %691 = vmatprep.subr.bf16.mxu0 0
          %692 = vmatpush1.bf16.msra.mxu0 0
          %693 = vmatprep.subr.bf16.mxu0 0
          %694 = vmatpush1.bf16.msra.mxu0 0
          %695 = vmatprep.subr.bf16.mxu0 0
          %696 = vmatpush1.bf16.msra.mxu0 0
          %697 = vmatprep.subr.bf16.mxu0 0
          %698 = vmatpush1.bf16.msra.mxu0 0
          %699 = vmatprep.mubr.bf16.mxu0 0
          %700 = vmatmul.mubr.bf16.gmra.mrb[0].mxu0 %v602
          %v701 = vpop.f32.mrb[0].mxu0
          %v702 = vadd.f32 0.0, %v701
          %v703 = vpop.f32.mrb[0].mxu0
          %v704 = vpop.f32.mrb[0].mxu0
          %v705 = vpop.f32.mrb[0].mxu0
          %706 = vdwg.mxu0
          %vm707 = vcmask 1041408
          %v708 = vsel %vm707, %v702, 0.0
          %v709 = vrot.slane %v708, 4
          %v710 = vadd.f32 %v708, %v709
          %v711 = vrot.slane %v710, 2
          %v712 = vadd.f32 %v710, %v711
          %v713 = vrot.slane %v712, 1
          %v714 = vadd.f32 %v712, %v713
          %v715 = vrcp.pop 2.0
          %v716 = vmul.f32 %v714, %v715
          %v717 = vsub.f32 %v702, %v716
          %v718 = vmul.f32 %v717, %v717
          %v719 = vsel %vm707, %v718, 0.0
          %v720 = vrot.slane %v719, 4
          %v721 = vadd.f32 %v719, %v720
          %v722 = vrot.slane %v721, 2
          %v723 = vadd.f32 %v721, %v722
          %v724 = vrot.slane %v723, 1
          %v725 = vadd.f32 %v723, %v724
          %v726 = vmul.f32 %v725, %v715
          %v727 = vadd.f32 %v726, 1e-05
          %v728 = vrsqrt.pop %v727
          %v729 = vmul.f32 %v717, %v728
          %v730 = vlaneseq
          %v731 = vshrl.u32 %v730, 7
          %v732 = vsub.s32 0, %v731
          %v733 = vrot.slane %v601, %v732
          %v734 = vmul.f32 %v729, %v733
          %v735 = vlaneseq
          %v736 = vshrl.u32 %v735, 7
          %v737 = vsub.s32 1, %v736
          %v738 = vrot.slane %v601, %v737
          %v739 = vadd.f32 %v734, %v738
          %v740 = vmax.f32 %v739, 0.0
          %v741 = vpack.c.bf16 %v740, %v740
          %v742 = vld [vmem:[%s3] sm:$0xf]
          %v743 = vld [vmem:[%s3 + $0x4] sm:$0xf]
          %v744 = vld [vmem:[%s3 + $0x8] sm:$0xf]
          %v745 = vld [vmem:[%s3 + $0xc] sm:$0xf]
          %v746 = vld [vmem:[%s3 + $0x10] sm:$0xf]
          %v747 = vld [vmem:[%s3 + $0x14] sm:$0xf]
          %v748 = vld [vmem:[%s3 + $0x18] sm:$0xf]
          %v749 = vld [vmem:[%s3 + $0x1c] sm:$0xf]
          %v750 = vld [vmem:[%s3 + $0x20] sm:$0xf]
          %v751 = vld [vmem:[%s3 + $0x24] sm:$0xf]
          %v752 = vld [vmem:[%s3 + $0x28] sm:$0xf]
          %v753 = vld [vmem:[%s3 + $0x2c] sm:$0xf]
          %v754 = vld [vmem:[%s3 + $0x30] sm:$0xf]
          %v755 = vld [vmem:[%s3 + $0x34] sm:$0xf]
          %v756 = vld [vmem:[%s3 + $0x38] sm:$0xf]
          %v757 = vld [vmem:[%s3 + $0x3c] sm:$0xf]
          %v774 = vunpack.c.l.b16 %v742
          %v775 = vunpack.c.l.b16 %v743
          %v776 = vunpack.c.l.b16 %v744
          %v777 = vunpack.c.l.b16 %v745
          %v778 = vunpack.c.l.b16 %v746
          %v779 = vunpack.c.l.b16 %v747
          %v780 = vunpack.c.l.b16 %v748
          %v781 = vunpack.c.l.b16 %v749
          %v782 = vunpack.c.l.b16 %v750
          %v783 = vunpack.c.l.b16 %v751
          %v784 = vunpack.c.l.b16 %v752
          %v785 = vunpack.c.l.b16 %v753
          %v786 = vunpack.c.l.b16 %v754
          %v787 = vunpack.c.l.b16 %v755
          %v788 = vunpack.c.l.b16 %v756
          %v789 = vunpack.c.l.b16 %v757
          %v790 = vpack.c.b16 %v775, %v774
          %v791 = vpack.c.b16 %v777, %v776
          %v792 = vpack.c.b16 %v779, %v778
          %v793 = vpack.c.b16 %v781, %v780
          %v794 = vpack.c.b16 %v783, %v782
          %v795 = vpack.c.b16 %v785, %v784
          %v796 = vpack.c.b16 %v787, %v786
          %v797 = vpack.c.b16 %v789, %v788
          %806 = vmatprep.subr.bf16.mxu0 0
          %807 = vmatpush1.bf16.msra.mxu0 %v790
          %808 = vmatprep.subr.bf16.mxu0 0
          %809 = vmatpush1.bf16.msra.mxu0 %v791
          %810 = vmatprep.subr.bf16.mxu0 0
          %811 = vmatpush1.bf16.msra.mxu0 %v792
          %812 = vmatprep.subr.bf16.mxu0 0
          %813 = vmatpush1.bf16.msra.mxu0 %v793
          %814 = vmatprep.subr.bf16.mxu0 0
          %815 = vmatpush1.bf16.msra.mxu0 %v794
          %816 = vmatprep.subr.bf16.mxu0 0
          %817 = vmatpush1.bf16.msra.mxu0 %v795
          %818 = vmatprep.subr.bf16.mxu0 0
          %819 = vmatpush1.bf16.msra.mxu0 %v796
          %820 = vmatprep.subr.bf16.mxu0 0
          %821 = vmatpush1.bf16.msra.mxu0 %v797
          %822 = vmatprep.subr.bf16.mxu0 0
          %823 = vmatpush1.bf16.msra.mxu0 0
          %824 = vmatprep.subr.bf16.mxu0 0
          %825 = vmatpush1.bf16.msra.mxu0 0
          %826 = vmatprep.subr.bf16.mxu0 0
          %827 = vmatpush1.bf16.msra.mxu0 0
          %828 = vmatprep.subr.bf16.mxu0 0
          %829 = vmatpush1.bf16.msra.mxu0 0
          %830 = vmatprep.subr.bf16.mxu0 0
          %831 = vmatpush1.bf16.msra.mxu0 0
          %832 = vmatprep.subr.bf16.mxu0 0
          %833 = vmatpush1.bf16.msra.mxu0 0
          %834 = vmatprep.subr.bf16.mxu0 0
          %835 = vmatpush1.bf16.msra.mxu0 0
          %836 = vmatprep.subr.bf16.mxu0 0
          %837 = vmatpush1.bf16.msra.mxu0 0
          %838 = vmatprep.mubr.bf16.mxu0 0
          %839 = vmatmul.mubr.bf16.gmra.mrb[0].mxu0 %v741
          %v840 = vpop.f32.mrb[0].mxu0
          %v841 = vadd.f32 0.0, %v840
          %v842 = vpop.f32.mrb[0].mxu0
          %v843 = vpop.f32.mrb[0].mxu0
          %v844 = vpop.f32.mrb[0].mxu0
          %845 = vdwg.mxu0
          %vm846 = vcmask 517120
          %v847 = vsel %vm846, %v841, 0.0
          %v848 = vrot.slane %v847, 4
          %v849 = vadd.f32 %v847, %v848
          %v850 = vrot.slane %v849, 2
          %v851 = vadd.f32 %v849, %v850
          %v852 = vrot.slane %v851, 1
          %v853 = vadd.f32 %v851, %v852
          %v854 = vmul.f32 %v853, %v715
          %v855 = vsub.f32 %v841, %v854
          %v856 = vmul.f32 %v855, %v855
          %v857 = vsel %vm846, %v856, 0.0
          %v858 = vrot.slane %v857, 4
          %v859 = vadd.f32 %v857, %v858
          %v860 = vrot.slane %v859, 2
          %v861 = vadd.f32 %v859, %v860
          %v862 = vrot.slane %v861, 1
          %v863 = vadd.f32 %v861, %v862
          %v864 = vmul.f32 %v863, %v715
          %v865 = vadd.f32 %v864, 1e-05
          %v866 = vrsqrt.pop %v865
          %v867 = vmul.f32 %v855, %v866
          %v868 = vlaneseq
          %v869 = vshrl.u32 %v868, 7
          %v870 = vsub.s32 2, %v869
          %v871 = vrot.slane %v601, %v870
          %v872 = vmul.f32 %v867, %v871
          %v873 = vlaneseq
          %v874 = vshrl.u32 %v873, 7
          %v875 = vsub.s32 3, %v874
          %v876 = vrot.slane %v601, %v875
          %v877 = vadd.f32 %v872, %v876
          %v878 = vmax.f32 %v877, 0.0
          %v879 = vpack.c.bf16 %v878, %v878
          %v880 = vld [vmem:[%s4] sm:$0xf]
          %v881 = vld [vmem:[%s4 + $0x4] sm:$0xf]
          %v882 = vld [vmem:[%s4 + $0x8] sm:$0xf]
          %v883 = vld [vmem:[%s4 + $0xc] sm:$0xf]
          %v884 = vld [vmem:[%s4 + $0x10] sm:$0xf]
          %v885 = vld [vmem:[%s4 + $0x14] sm:$0xf]
          %v886 = vld [vmem:[%s4 + $0x18] sm:$0xf]
          %v887 = vld [vmem:[%s4 + $0x1c] sm:$0xf]
          %v888 = vlaneseq
          %v889 = vshrl.u32 %v888, 7
          %v890 = vsub.s32 4, %v889
          %v891 = vrot.slane %v601, %v890
          %v900 = vunpack.c.l.b16 %v880
          %v901 = vunpack.c.l.b16 %v881
          %v902 = vunpack.c.l.b16 %v882
          %v903 = vunpack.c.l.b16 %v883
          %v904 = vunpack.c.l.b16 %v884
          %v905 = vunpack.c.l.b16 %v885
          %v906 = vunpack.c.l.b16 %v886
          %v907 = vunpack.c.l.b16 %v887
          %v908 = vpack.c.b16 %v901, %v900
          %v909 = vpack.c.b16 %v903, %v902
          %v910 = vpack.c.b16 %v905, %v904
          %v911 = vpack.c.b16 %v907, %v906
          %vm916 = vcmask 523264
          %v918 = vsel %vm916, %v879, 0
          %920 = vmatprep.subr.bf16.mxu0 0
          %921 = vmatpush1.bf16.msra.mxu0 %v908
          %922 = vmatprep.subr.bf16.mxu0 0
          %923 = vmatpush1.bf16.msra.mxu0 %v909
          %924 = vmatprep.subr.bf16.mxu0 0
          %925 = vmatpush1.bf16.msra.mxu0 %v910
          %926 = vmatprep.subr.bf16.mxu0 0
          %927 = vmatpush1.bf16.msra.mxu0 %v911
          %928 = vmatprep.subr.bf16.mxu0 0
          %929 = vmatpush1.bf16.msra.mxu0 0
          %930 = vmatprep.subr.bf16.mxu0 0
          %931 = vmatpush1.bf16.msra.mxu0 0
          %932 = vmatprep.subr.bf16.mxu0 0
          %933 = vmatpush1.bf16.msra.mxu0 0
          %934 = vmatprep.subr.bf16.mxu0 0
          %935 = vmatpush1.bf16.msra.mxu0 0
          %936 = vmatprep.subr.bf16.mxu0 0
          %937 = vmatpush1.bf16.msra.mxu0 0
          %938 = vmatprep.subr.bf16.mxu0 0
          %939 = vmatpush1.bf16.msra.mxu0 0
          %940 = vmatprep.subr.bf16.mxu0 0
          %941 = vmatpush1.bf16.msra.mxu0 0
          %942 = vmatprep.subr.bf16.mxu0 0
          %943 = vmatpush1.bf16.msra.mxu0 0
          %944 = vmatprep.subr.bf16.mxu0 0
          %945 = vmatpush1.bf16.msra.mxu0 0
          %946 = vmatprep.subr.bf16.mxu0 0
          %947 = vmatpush1.bf16.msra.mxu0 0
          %948 = vmatprep.subr.bf16.mxu0 0
          %949 = vmatpush1.bf16.msra.mxu0 0
          %950 = vmatprep.subr.bf16.mxu0 0
          %951 = vmatpush1.bf16.msra.mxu0 0
          %952 = vmatprep.mubr.bf16.mxu0 0
          %953 = vmatmul.mubr.bf16.gmra.mrb[0].mxu0 %v918
          %v954 = vpop.f32.mrb[0].mxu0
          %v955 = vadd.f32 %v891, %v954
          %v956 = vpop.f32.mrb[0].mxu0
          %v957 = vpop.f32.mrb[0].mxu0
          %v958 = vpop.f32.mrb[0].mxu0
          %959 = vdwg.mxu0
          %960 = vst [vmem:[#allocation6] sm:$0x3] %v955
        $region56: #{res_tn_f_forward.1} parent=43 // pred_fallthru
          _
        // Predicated region
        $region57: #{res_tn_f_forward.1} parent=43 // pred_check
          %p961 = pneg %p170
        $region58: #{res_tn_f_forward.1} parent=43 // pred_check_branch
          %963 = sbr.rel (%p961) target = $region60
        $region59: #{res_tn_f_forward.1} parent=43 // pred_region
          %s965 = ssub.s32 32, 32
          %966 = vsyncadd [#allocation5], %s965
          %s968 = sshll.u32 [#allocation6], 4
          %s969 = int_to_ptr.vmem [resolvable:$true] %s968
          %971 = dma.vmem_to_hbm [thread:$0]  %s969, 32, %s6, [#allocation5]
        $region60: #{res_tn_f_forward.1} parent=43 // pred_fallthru
          _
        // Predicated region
        $region61: #{res_tn_f_forward.1} parent=43 // pred_check
          %p972 = pneg %p170
        $region62: #{res_tn_f_forward.1} parent=43 // pred_check_branch
          %974 = sbr.rel (%p972) target = $region64
        $region63: #{res_tn_f_forward.1} parent=43 // pred_region
          %975 = dma.done [#allocation5], 32
        $region64: #{res_tn_f_forward.1} parent=43 // pred_fallthru
          _
      $region44: #{res_tn_f_forward.1} parent=5 // pred_fallthru
        _
      %p976 = scmp.le.s32.totalorder 2, %s16
      // Predicated region
      $region65: #{res_tn_f_forward.1} parent=5 // pred_check
        %p977 = pneg %p976
      $region66: #{res_tn_f_forward.1} parent=5 // pred_check_branch
        %979 = sbr.rel (%p977) target = $region68
      $region67: #{res_tn_f_forward.1} parent=5 // pred_region
        %s980 = ssub.s32 %s16, 2
      $region68: #{res_tn_f_forward.1} parent=5 // pred_fallthru
        _
    $region6: #{res_tn_f_forward.1} parent=1 // loop_footer
      %s20 = sadd.s32 1, %s16
    $region7: #{res_tn_f_forward.1} parent=1 // loop_footer_branch
      %15 = sbr.rel target = $region3
    $region8: #{res_tn_f_forward.1} parent=1 // loop_exit
      _
    %981 = vsyncpa [#allocation4], 1
    %s982 = scalar_lea.sflag [#allocation4], 1
    %983 = vsyncpa %s982, 1
    %984 = vsyncpa [#allocation5], 1
    %s985 = scalar_lea.sflag [#allocation5], 1
    %986 = vsyncpa %s985, 1

</llo_original>
